<compile_context>
chip_gen: v5e
topology: v5e:2x2
jax: 0.10.0
libtpu: 0.0.40
codegen_flags: <defaults>
</compile_context>

<pallas_src>
import functools

import jax
import jax.numpy as jnp
from jax.experimental import pallas as pl
from jax.experimental.pallas import tpu as pltpu


EPS = 1e-5
_LANES = 128
# Sublane packing unit per element size (32-bit -> 8, 16-bit -> 16, 8-bit -> 32).
_SUBLANE = {4: 8, 2: 16, 1: 32}


def _round_up(x, m):
    return ((x + m - 1) // m) * m


def _tpu_vmem_capacity_bytes():
    """Per-core physical VMEM; conservative (v7x-sized) fallback if unavailable."""
    try:
        cap = int(pltpu.get_tpu_info().vmem_capacity_bytes)
        if cap > 0:
            return cap
    except Exception:
        pass
    return 64 << 20


def _has_bf16_valu():
    """bf16 VALU exists on v6e/v7x; v5e (and older) upconvert bf16 vector math."""
    try:
        kind = jax.devices()[0].device_kind.lower()
    except Exception:
        return False
    return any(tag in kind for tag in ("v6", "v7", "7x"))


def _moments(s1, s2, emb_dim):
    """mean and 1/std from one-pass sums (f32)."""
    inv_e = 1.0 / emb_dim
    mean = s1 * inv_e
    # One-pass variance; clamp guards tiny negative values from rounding.
    var = jnp.maximum(s2 * inv_e - mean * mean, 0.0)
    inv_std = jax.lax.rsqrt(var + EPS)          # EUP slot (free next to VPU work)
    return mean, inv_std


def layernorm_kernel(x_ref, scale_ref, shift_ref, o_ref, *, emb_dim, num_segs, bf16_fast):
    if num_segs == 1:
        if bf16_fast:
            # v6e/v7x bf16 path: both row reductions go to the (idle) MXU via a
            # dot against a ones column (exact f32 accumulation for s1); the
            # normalize + affine tail stays in bf16 on the bf16 VALU.
            # TODO(synk): E[x^2] here uses bf16 squares; add a two-pass fallback
            # for data with |mean| >> std (catastrophic cancellation).
            x = x_ref[...]
            ones = jnp.ones((emb_dim, 1), dtype=x.dtype)
            s1 = jnp.dot(x, ones, preferred_element_type=jnp.float32)       # (B, 1)
            s2 = jnp.dot(x * x, ones, preferred_element_type=jnp.float32)   # (B, 1)
            mean, inv_std = _moments(s1, s2, emb_dim)
            norm = (x - mean.astype(x.dtype)) * inv_std.astype(x.dtype)
            out = scale_ref[...] * norm + shift_ref[...]
            o_ref[...] = out.astype(o_ref.dtype)
        else:
            # f32 (and non-bf16-VALU chips): exact f32 math, reductions on VPU/XLU.
            xf = x_ref[...].astype(jnp.float32)
            s1 = jnp.sum(xf, axis=-1, keepdims=True)
            s2 = jnp.sum(xf * xf, axis=-1, keepdims=True)
            mean, inv_std = _moments(s1, s2, emb_dim)
            norm = (xf - mean) * inv_std
            out = scale_ref[...] * norm.astype(scale_ref.dtype) + shift_ref[...]
            o_ref[...] = out.astype(o_ref.dtype)
    else:
        # Lane-folded path (emb_dim < 128): num_segs rows live side by side in the
        # 128-lane dimension.  Per-segment stats via static lane slices (exact
        # f32); the concatenated result keeps the store full-lane (unmasked vst).
        xf = x_ref[...].astype(jnp.float32)
        pieces = []
        for s in range(num_segs):                       # static unroll, num_segs <= 16
            xs = xf[:, s * emb_dim:(s + 1) * emb_dim]
            s1 = jnp.sum(xs, axis=-1, keepdims=True)
            s2 = jnp.sum(xs * xs, axis=-1, keepdims=True)
            mean, inv_std = _moments(s1, s2, emb_dim)
            pieces.append((xs - mean) * inv_std)
        norm = jnp.concatenate(pieces, axis=-1)
        out = scale_ref[...] * norm.astype(scale_ref.dtype) + shift_ref[...]
        o_ref[...] = out.astype(o_ref.dtype)


def _choose_block_rows(rows, width, itemsize, requested, vmem_budget, bf16_fast):
    """Largest row tile that fits the VMEM budget, with >= ~4 grid steps when possible."""
    sublane = _SUBLANE.get(itemsize, 8)
    if requested is None:
        # Per-element footprint: double-buffered in+out in the source dtype plus
        # the in-kernel whole-tile temporaries (slimmer on the bf16 fast path).
        temps = 8 if bf16_fast else 12
        per_row = max(1, width * (4 * itemsize + temps))
        requested = min(4096, max(sublane, vmem_budget // per_row))
        # Guarantee >= ~4 grid steps so the "parallel" row axis can shard across
        # the two TensorCores on v7x (and the pipeline has work to overlap).
        if rows > 2 * sublane:
            per_step = _round_up(-(-rows // 4), sublane)
            requested = min(requested, max(sublane, per_step))
    block_rows = max(sublane, (int(requested) // sublane) * sublane)
    # TODO(synk): no feature-dim-split fallback -- for emb_dim so large that even
    # one sublane of rows overflows VMEM this will fail to compile.
    return min(block_rows, _round_up(rows, sublane))


def layer_norm(x, scale, shift, *, block_rows=None):
    """LayerNorm over the last axis of x. scale/shift have shape (emb_dim,)."""
    orig_shape = x.shape
    emb_dim = orig_shape[-1]
    x2d = x.reshape(-1, emb_dim)
    rows = x2d.shape[0]
    itemsize = jnp.dtype(x.dtype).itemsize

    # Lane folding: for emb_dim < 128 that divides 128, pack k = 128 // emb_dim
    # rows per 128-lane vreg row so output stores are unmasked full-lane vst.
    num_segs = 1
    if emb_dim < _LANES and _LANES % emb_dim == 0 and emb_dim >= 8:
        num_segs = _LANES // emb_dim
    width = emb_dim * num_segs

    rows_eff = rows
    if num_segs > 1:
        rows_p = _round_up(rows, num_segs)
        if rows_p != rows:                                # tiny (< num_segs rows) pad
            x2d = jnp.pad(x2d, ((0, rows_p - rows), (0, 0)))
        x2d = x2d.reshape(rows_p // num_segs, width)
        rows_eff = rows_p // num_segs

    use_bf16 = (x.dtype == jnp.bfloat16) and _has_bf16_valu()
    bf16_fast = use_bf16 and num_segs == 1
    affine_dtype = jnp.bfloat16 if use_bf16 else jnp.float32

    # Generation-aware sizing: budget ~half the physical per-core VMEM for the
    # pipeline working set (v5e/v6e: ~64 MiB; v7x / fallback: ~32 MiB).
    vmem_cap = _tpu_vmem_capacity_bytes()
    vmem_budget = max(16 << 20, vmem_cap // 2)
    block_rows = _choose_block_rows(rows_eff, width, itemsize, block_rows,
                                    vmem_budget, bf16_fast)
    grid = (pl.cdiv(rows_eff, block_rows),)              # partial last block is masked

    scale_row = scale.reshape(1, emb_dim).astype(affine_dtype)
    shift_row = shift.reshape(1, emb_dim).astype(affine_dtype)
    if num_segs > 1:
        scale_row = jnp.tile(scale_row, (1, num_segs))
        shift_row = jnp.tile(shift_row, (1, num_segs))

    aff_size = jnp.dtype(affine_dtype).itemsize
    vmem_limit = int(
        4 * block_rows * width * itemsize          # input + output double buffers
        + 3 * block_rows * width * 4               # f32 whole-tile temporaries
        + block_rows * width * aff_size            # affine-dtype temporary
        + 8 * width * 4                            # resident scale/shift
        + (2 << 20)                                # Mosaic internal scratch headroom
    )
    vmem_limit = int(min(max(vmem_limit, 8 << 20), (vmem_cap * 3) // 4))

    kernel = functools.partial(layernorm_kernel, emb_dim=emb_dim,
                               num_segs=num_segs, bf16_fast=bf16_fast)

    out = pl.pallas_call(
        kernel,
        out_shape=jax.ShapeDtypeStruct((rows_eff, width), x.dtype),
        grid_spec=pltpu.PrefetchScalarGridSpec(
            num_scalar_prefetch=0,
            grid=grid,
            in_specs=[
                # TODO(synk): sweep pipeline_mode=pl.Buffered(3) here for very
                # small tiles if xprof ever shows exposed DMA.
                pl.BlockSpec((block_rows, width), lambda i: (i, 0)),
                # constant index_map -> scale/shift stay resident across the grid
                pl.BlockSpec((1, width), lambda i: (0, 0)),
                pl.BlockSpec((1, width), lambda i: (0, 0)),
            ],
            out_specs=pl.BlockSpec((block_rows, width), lambda i: (i, 0)),
        ),
        compiler_params=pltpu.CompilerParams(
            dimension_semantics=("parallel",),     # shards rows across v7x's 2 TCs
            vmem_limit_bytes=vmem_limit,
        ),
    )(x2d, scale_row, shift_row)

    if num_segs > 1:
        out = out.reshape(rows_eff * num_segs, emb_dim)[:rows]
    return out.reshape(orig_shape)


def layer_norm_ref(x, scale, shift):
    xf = x.astype(jnp.float32)
    mean = jnp.mean(xf, axis=-1, keepdims=True)
    var = jnp.mean((xf - mean) ** 2, axis=-1, keepdims=True)
    norm = (xf - mean) / jnp.sqrt(var + EPS)
    return (scale * norm + shift).astype(x.dtype)


if __name__ == "__main__":
    key = jax.random.PRNGKey(0)
    ks = jax.random.split(key, 8)

    # (1) Primary lane-dense case: emb_dim % 128 == 0, f32.
    emb = 128
    x = jax.random.normal(ks[0], (2, 8, emb), dtype=jnp.float32)
    scale = jnp.ones((emb,), dtype=jnp.float32)
    shift = jnp.zeros((emb,), dtype=jnp.float32)
    out = jax.block_until_ready(layer_norm(x, scale, shift))
    ref = layer_norm_ref(x, scale, shift)
    assert out.shape == x.shape and out.dtype == x.dtype
    assert jnp.allclose(out, ref, atol=1e-5, rtol=1e-5)

    # (2) bf16, rows=64 -> multi-step grid; exercises the MXU-moments + bf16
    #     affine fast path on v6e/v7x (pure f32 path on v5e and older).
    xb = jax.random.normal(ks[1], (4, 16, emb), dtype=jnp.bfloat16)
    sb = 1.0 + 0.1 * jax.random.normal(ks[2], (emb,), dtype=jnp.float32)
    bb = 0.1 * jax.random.normal(ks[3], (emb,), dtype=jnp.float32)
    outb = jax.block_until_ready(layer_norm(xb, sb, bb))
    refb = layer_norm_ref(xb, sb, bb)
    assert outb.dtype == jnp.bfloat16
    assert jnp.allclose(outb.astype(jnp.float32), refb.astype(jnp.float32),
                        atol=5e-2, rtol=5e-2)

    # (3) emb_dim < 128: lane-folded path (k=4), rows not divisible by k.
    xs = jax.random.normal(ks[4], (1, 13, 32), dtype=jnp.float32)
    ss = jnp.full((32,), 1.5, dtype=jnp.float32)
    sh = jnp.full((32,), 0.25, dtype=jnp.float32)
    outs = jax.block_until_ready(layer_norm(xs, ss, sh))
    refs = layer_norm_ref(xs, ss, sh)
    assert jnp.allclose(outs, refs, atol=1e-5, rtol=1e-5)

    # (4) Multi-step grid with a partial (masked) last row block: rows=111, emb=256.
    xm = jax.random.normal(ks[5], (3, 37, 256), dtype=jnp.float32)
    sm = 1.0 + 0.2 * jax.random.normal(ks[6], (256,), dtype=jnp.float32)
    bm = 0.1 * jax.random.normal(ks[7], (256,), dtype=jnp.float32)
    outm = jax.block_until_ready(layer_norm(xm, sm, bm))
    refm = layer_norm_ref(xm, sm, bm)
    assert jnp.allclose(outm, refm, atol=1e-5, rtol=1e-5)

    print("KERNEL_OK")
</pallas_src>

<mosaic_0001>
module attributes {stable_mosaic.version = 11 : i64} {
  func.func @layernorm_kernel(%arg0: i32, %arg1: memref<16x128xf32, #tpu.memory_space<vmem>>, %arg2: memref<1x128xf32, #tpu.memory_space<vmem>>, %arg3: memref<1x128xf32, #tpu.memory_space<vmem>>, %arg4: memref<16x128xf32, #tpu.memory_space<vmem>>) attributes {dimension_semantics = [#tpu.dimension_semantics<parallel>], iteration_bounds = array<i64: 1>, scalar_prefetch = 0 : i64, scratch_operands = 0 : i64, tpu.core_type = #tpu.core_type<tc>, window_params = [{transform_indices = @transform_0, window_bounds = array<i64: 16, 128>}, {pipeline_mode = #tpu.pipeline_mode<synchronous>, transform_indices = @transform_1, window_bounds = array<i64: 1, 128>}, {pipeline_mode = #tpu.pipeline_mode<synchronous>, transform_indices = @transform_2, window_bounds = array<i64: 1, 128>}, {transform_indices = @transform_3, window_bounds = array<i64: 16, 128>}]} {
    %c0 = arith.constant 0 : index
    %c0_0 = arith.constant 0 : index
    %0 = vector.load %arg1[%c0, %c0_0] : memref<16x128xf32, #tpu.memory_space<vmem>>, vector<16x128xf32>
    %cst = arith.constant dense<0.000000e+00> : vector<16xf32>
    %1 = vector.multi_reduction <add>, %0, %cst [1] : vector<16x128xf32> to vector<16xf32>
    %2 = vector.shape_cast %1 : vector<16xf32> to vector<16x1xf32>
    %3 = arith.mulf %0, %0 : vector<16x128xf32>
    %cst_1 = arith.constant dense<0.000000e+00> : vector<16xf32>
    %4 = vector.multi_reduction <add>, %3, %cst_1 [1] : vector<16x128xf32> to vector<16xf32>
    %5 = vector.shape_cast %4 : vector<16xf32> to vector<16x1xf32>
    %cst_2 = arith.constant 7.812500e-03 : f32
    %6 = vector.broadcast %cst_2 : f32 to vector<16x1xf32>
    %7 = arith.mulf %2, %6 : vector<16x1xf32>
    %cst_3 = arith.constant 7.812500e-03 : f32
    %8 = vector.broadcast %cst_3 : f32 to vector<16x1xf32>
    %9 = arith.mulf %5, %8 : vector<16x1xf32>
    %10 = arith.mulf %7, %7 : vector<16x1xf32>
    %11 = arith.subf %9, %10 : vector<16x1xf32>
    %cst_4 = arith.constant 0.000000e+00 : f32
    %12 = vector.broadcast %cst_4 : f32 to vector<16x1xf32>
    %13 = arith.maximumf %11, %12 : vector<16x1xf32>
    %cst_5 = arith.constant 9.99999974E-6 : f32
    %14 = vector.broadcast %cst_5 : f32 to vector<16x1xf32>
    %15 = arith.addf %13, %14 : vector<16x1xf32>
    %16 = math.rsqrt %15 : vector<16x1xf32>
    %17 = vector.broadcast %7 : vector<16x1xf32> to vector<16x128xf32>
    %18 = arith.subf %0, %17 : vector<16x128xf32>
    %19 = vector.broadcast %16 : vector<16x1xf32> to vector<16x128xf32>
    %20 = arith.mulf %18, %19 : vector<16x128xf32>
    %c0_6 = arith.constant 0 : index
    %c0_7 = arith.constant 0 : index
    %21 = vector.load %arg2[%c0_6, %c0_7] : memref<1x128xf32, #tpu.memory_space<vmem>>, vector<1x128xf32>
    %22 = vector.broadcast %21 : vector<1x128xf32> to vector<16x128xf32>
    %23 = arith.mulf %22, %20 : vector<16x128xf32>
    %c0_8 = arith.constant 0 : index
    %c0_9 = arith.constant 0 : index
    %24 = vector.load %arg3[%c0_8, %c0_9] : memref<1x128xf32, #tpu.memory_space<vmem>>, vector<1x128xf32>
    %25 = vector.broadcast %24 : vector<1x128xf32> to vector<16x128xf32>
    %26 = arith.addf %23, %25 : vector<16x128xf32>
    %c0_10 = arith.constant 0 : index
    %c0_11 = arith.constant 0 : index
    %27 = vector.load %arg4[%c0_10, %c0_11] : memref<16x128xf32, #tpu.memory_space<vmem>>, vector<16x128xf32>
    tpu.vector_store %arg4[%c0_10, %c0_11], %26 {strides = array<i32>} : memref<16x128xf32, #tpu.memory_space<vmem>>, vector<16x128xf32>,
    return
  }
  func.func @transform_0(%arg0: i32) -> (i32, i32) {
    %c0_i32 = arith.constant 0 : i32
    %c0_i32_0 = arith.constant 0 : i32
    return %arg0, %c0_i32 : i32, i32
  }
  func.func @transform_1(%arg0: i32) -> (i32, i32) {
    %c0_i32 = arith.constant 0 : i32
    %c0_i32_0 = arith.constant 0 : i32
    %c0_i32_1 = arith.constant 0 : i32
    return %c0_i32, %c0_i32_0 : i32, i32
  }
  func.func @transform_2(%arg0: i32) -> (i32, i32) {
    %c0_i32 = arith.constant 0 : i32
    %c0_i32_0 = arith.constant 0 : i32
    %c0_i32_1 = arith.constant 0 : i32
    return %c0_i32, %c0_i32_0 : i32, i32
  }
  func.func @transform_3(%arg0: i32) -> (i32, i32) {
    %c0_i32 = arith.constant 0 : i32
    %c0_i32_0 = arith.constant 0 : i32
    return %arg0, %c0_i32 : i32, i32
  }
}

</mosaic_0001>

<llo_original>
// kernel: tpu_custom_call.1
$region0: #{tpu_custom_call.1}
  #allocation0 [shape = 'u32[]', space=smem, size = 0x4, offset = 0x4, fixed_abs, tag = 'smem constant byte address 0x4 - core index']
  #allocation1 [shape = 'u32[72,128]{1,0:T(1,128)}', space=vmem, size = 0x9000, scoped, tag = 'internal scratch']
  %s0 = inlined_call_operand.hbm [shape: f32[16,128], index: 0, kind: input, shape index: {}]
  %s1 = inlined_call_operand.hbm [shape: f32[1,128], index: 1, kind: input, shape index: {}]
  %s2 = inlined_call_operand.vmem [shape: f32[1,128], index: 2, kind: input, shape index: {}]
  %s3 = inlined_call_operand.hbm [shape: f32[16,128], index: 3, kind: output, shape index: {}]
  %s4 = sld [smem:[#allocation0]]
  $region30: #{tpu_custom_call.1} parent=0
    _
  %s6 = ssub.s32 1, %s4
  %s7 = scalar_select 0, %s6, %s4
  $region1: #{tpu_custom_call.1} parent=0
    #allocation2 [shape = 'u8[8192]{0}', space=vmem, size = 0x2000, scoped, tag = 'input window, operand 0, single buffered']
    #allocation3 [shape = 's32[1]{0}', space=sflag, size = 0x4, scoped, tag = 'scoped memory for tpu_custom_call.1']
    #allocation4 [shape = 's32[1]{0}', space=sflag, size = 0x4, scoped, tag = 'scoped memory for tpu_custom_call.1']
    #allocation5 [shape = 'u8[512]{0}', space=vmem, size = 0x400, scoped, tag = 'input window, operand 1, single buffered']
    #allocation6 [shape = 's32[1]{0}', space=sflag, size = 0x4, scoped, tag = 'scoped memory for tpu_custom_call.1']
    #allocation7 [shape = 'u8[8192]{0}', space=vmem, size = 0x2000, scoped, tag = 'output window, operand 0, single buffered']
    %8 = vsyncpa [#allocation3], 0
    %9 = vsyncpa [#allocation6], 0
    %10 = vsyncpa [#allocation4], 0
    // Predicated region
    $region2: #{tpu_custom_call.1} parent=1 // pred_check
      _
    $region3: #{tpu_custom_call.1} parent=1 // pred_check_branch
      %12 = sbr.rel (0) target = $region5
    $region4: #{tpu_custom_call.1} parent=1 // pred_region
      %14 = vsyncadd [#allocation3], 0
      %s15 = sshll.u32 %s0, 4
      %s16 = int_to_ptr.hbm [resolvable:$true] %s15
      %s17 = sshll.u32 [#allocation2], 4
      %s18 = int_to_ptr.vmem [resolvable:$true] %s17
      %23 = dma.hbm_to_vmem [thread:$0]  %s16, 256, %s18, [#allocation3], 128, 128, 8
    $region5: #{tpu_custom_call.1} parent=1 // pred_fallthru
      _
    // Predicated region
    $region6: #{tpu_custom_call.1} parent=1 // pred_check
      _
    $region7: #{tpu_custom_call.1} parent=1 // pred_check_branch
      %25 = sbr.rel (0) target = $region9
    $region8: #{tpu_custom_call.1} parent=1 // pred_region
      %27 = vsyncadd [#allocation6], 0
      %s29 = sshll.u32 %s1, 4
      %s30 = int_to_ptr.hbm [resolvable:$true] %s29
      %s31 = sshll.u32 [#allocation5], 4
      %s32 = int_to_ptr.vmem [resolvable:$true] %s31
      %34 = dma.hbm_to_vmem [thread:$0]  %s30, 16, %s32, [#allocation6]
    $region9: #{tpu_custom_call.1} parent=1 // pred_fallthru
      _
    // Predicated region
    $region10: #{tpu_custom_call.1} parent=1 // pred_check
      _
    $region11: #{tpu_custom_call.1} parent=1 // pred_check_branch
      %36 = sbr.rel (0) target = $region13
    $region12: #{tpu_custom_call.1} parent=1 // pred_region
      _
    $region13: #{tpu_custom_call.1} parent=1 // pred_fallthru
      _
    // Predicated region
    $region14: #{tpu_custom_call.1} parent=1 // pred_check
      _
    $region15: #{tpu_custom_call.1} parent=1 // pred_check_branch
      %38 = sbr.rel (0) target = $region17
    $region16: #{tpu_custom_call.1} parent=1 // pred_region
      %40 = dma.done [#allocation3], 256
    $region17: #{tpu_custom_call.1} parent=1 // pred_fallthru
      _
    // Predicated region
    $region18: #{tpu_custom_call.1} parent=1 // pred_check
      _
    $region19: #{tpu_custom_call.1} parent=1 // pred_check_branch
      %42 = sbr.rel (0) target = $region21
    $region20: #{tpu_custom_call.1} parent=1 // pred_region
      %44 = dma.done [#allocation6], 16
    $region21: #{tpu_custom_call.1} parent=1 // pred_fallthru
      _
    %v45 = vld [vmem:[#allocation2] sm:$0xff]
    %v46 = vld [vmem:[#allocation2 + $0x8] sm:$0xff]
    %47 = vadd.xlane.f32.xlu0 %v45
    %v48 = vpop.xlane.xlu0 %47
    %49 = vadd.xlane.f32.xlu0 %v46
    %v50 = vpop.xlane.xlu0 %49
    %v51 = vmul.f32 %v45, %v45
    %v52 = vmul.f32 %v46, %v46
    %53 = vadd.xlane.f32.xlu0 %v51
    %v54 = vpop.xlane.xlu0 %53
    %55 = vadd.xlane.f32.xlu0 %v52
    %v56 = vpop.xlane.xlu0 %55
    %v57 = vmul.f32 %v48, 0.0078125
    %v58 = vmul.f32 %v50, 0.0078125
    %v59 = vmul.f32 %v54, 0.0078125
    %v60 = vmul.f32 %v56, 0.0078125
    %v61 = vmul.f32 %v57, %v57
    %v62 = vmul.f32 %v58, %v58
    %v63 = vsub.f32 %v59, %v61
    %v64 = vsub.f32 %v60, %v62
    %v65 = vmax.f32 %v63, 0.0
    %v66 = vmax.f32 %v64, 0.0
    %v67 = vadd.f32 %v65, 1e-05
    %v68 = vadd.f32 %v66, 1e-05
    %v69 = vrsqrt.pop %v67
    %v70 = vmul.f32 %v69, %v67
    %v71 = vmul.f32 %v70, %v69
    %v72 = vmul.f32 0.5, %v71
    %v73 = vsub.f32 1.5, %v72
    %v74 = vmul.f32 %v69, %v73
    %vm75 = vweird.f32 %v67
    %vm76 = vweird.f32 %v69
    %vm77 = vmor %vm75, %vm76
    %v78 = vsel %vm77, %v69, %v74
    %v79 = vrsqrt.pop %v68
    %v80 = vmul.f32 %v79, %v68
    %v81 = vmul.f32 %v80, %v79
    %v82 = vmul.f32 0.5, %v81
    %v83 = vsub.f32 1.5, %v82
    %v84 = vmul.f32 %v79, %v83
    %vm85 = vweird.f32 %v68
    %vm86 = vweird.f32 %v79
    %vm87 = vmor %vm85, %vm86
    %v88 = vsel %vm87, %v79, %v84
    %v89 = vsub.f32 %v45, %v57
    %v90 = vsub.f32 %v46, %v58
    %v91 = vmul.f32 %v89, %v78
    %v92 = vmul.f32 %v90, %v88
    %v93 = vld [vmem:[#allocation5] sm:$0x1]
    %v95 = vperm.slane %v93, 0
    %v97 = vmul.f32 %v95, %v91
    %v98 = vmul.f32 %v95, %v92
    %v99 = vld [vmem:[%s2] sm:$0x1]
    %v101 = vperm.slane %v99, 0
    %v103 = vadd.f32 %v97, %v101
    %v104 = vadd.f32 %v98, %v101
    %105 = vst [vmem:[#allocation7] sm:$0xff] %v103
    %106 = vst [vmem:[#allocation7 + $0x8] sm:$0xff] %v104
    // Predicated region
    $region22: #{tpu_custom_call.1} parent=1 // pred_check
      _
    $region23: #{tpu_custom_call.1} parent=1 // pred_check_branch
      %108 = sbr.rel (0) target = $region25
    $region24: #{tpu_custom_call.1} parent=1 // pred_region
      %110 = vsyncadd [#allocation4], 0
      %s111 = sshll.u32 [#allocation7], 4
      %s112 = int_to_ptr.vmem [resolvable:$true] %s111
      %s113 = sshll.u32 %s3, 4
      %s114 = int_to_ptr.hbm [resolvable:$true] %s113
      %119 = dma.vmem_to_hbm [thread:$0]  %s112, 256, %s114, [#allocation4], 128, 128, 8
    $region25: #{tpu_custom_call.1} parent=1 // pred_fallthru
      _
    // Predicated region
    $region26: #{tpu_custom_call.1} parent=1 // pred_check
      _
    $region27: #{tpu_custom_call.1} parent=1 // pred_check_branch
      %121 = sbr.rel (0) target = $region29
    $region28: #{tpu_custom_call.1} parent=1 // pred_region
      %123 = dma.done [#allocation4], 256
    $region29: #{tpu_custom_call.1} parent=1 // pred_fallthru
      _
    %124 = vsyncpa [#allocation3], 1
    %125 = vsyncpa [#allocation6], 1
    %126 = vsyncpa [#allocation4], 1

</llo_original>
